<compile_context>
chip_gen: v7x
topology: tpu7x:2x2x1
jax: 0.10.0
libtpu: 0.0.40
codegen_flags: <defaults>
</compile_context>

<pallas_src>
import functools

import jax
import jax.numpy as jnp
from jax.experimental import pallas as pl
from jax.experimental.pallas import tpu as pltpu


def _round_up(x, m):
    return ((x + m - 1) // m) * m


def _vmem_budget_and_limit():
    """Generation-aware VMEM numbers: (tile sizing budget, vmem_limit_bytes)."""
    cap = 64 * 1024 * 1024                      # assume the smallest (v7x) if query fails
    try:
        info = pltpu.get_tpu_info()
        cap = int(getattr(info, "vmem_capacity_bytes", cap))
    except Exception:
        pass
    vmem_limit = int(min((cap * 3) // 4, 100 * 1024 * 1024))   # v7x ~48 MiB, v5e/v6e ~96 MiB
    tile_budget = int((vmem_limit * 2) // 3)                   # headroom for compiler scratch
    return tile_budget, vmem_limit


def _choose_tile_l(l_out, n_batch, c_in, c_out, winsize, in_bytes, budget_bytes):
    """Pick a length tile (multiple of 128) so that double-buffered blocks plus
    ALL in-kernel temporaries stay within the VMEM budget, while keeping blocks
    large (>= ~1 MiB) so the pipeline is bandwidth- not per-step-overhead-bound."""
    r8 = lambda v: _round_up(max(int(v), 1), 8)
    per_col = (
        2 * in_bytes * r8(c_in)           # main input block, double-buffered
        + 2 * in_bytes * r8(c_out)        # output block, double-buffered
        + 2 * in_bytes * r8(c_in)         # window concat + masked copy
        + winsize * in_bytes * r8(c_in)   # per-tap shifted slices
        + 4 * r8(c_in)                    # iota / mask temporaries
        + 4 * r8(c_in)                    # f32 residual temp
        + 3 * 4 * r8(c_out)               # f32 accumulator / activation / cast temps
    )
    tl = budget_bytes // max(per_col, 1)
    tl = max(128, (tl // 128) * 128)
    tl = min(tl, 64 * 1024)                               # diminishing returns past ~64K cols
    tl = min(tl, max(128, _round_up(l_out, 128)))         # never bigger than needed
    if n_batch == 1 and l_out > 128:
        # Keep >= 2 length tiles so both v7x TensorCores get work.
        tl = min(tl, max(128, _round_up(-(-l_out // 2), 128)))
    return int(tl)


def _cnn_encoder_kernel(xm_ref, xl_ref, xr_ref, w_ref, b_ref, o_ref, *,
                        tile_l, l_in, padding, winsize, nonlinear, short_cut):
    # xm_ref: (1, C_in, tile_l)  main tile of the UNPADDED input (NCL layout)
    # xl_ref: (1, C_in, 128)     128 columns preceding the tile (clamped at edges)
    # xr_ref: (1, C_in, 128)     128 columns following the tile (clamped at edges)
    # w_ref:  (W, C_out, C_in)   per-tap weights, native dtype
    # b_ref:  (C_out, 1)         f32 bias
    # o_ref:  (1, C_out, tile_l)
    t = pl.program_id(1)

    # Lane-aligned concat (all pieces are multiples of 128 columns wide).
    xwin = jnp.concatenate([xl_ref[0], xm_ref[0], xr_ref[0]], axis=-1)  # (C_in, tile_l+256)

    # One lane-dense select realises: the conv zero-padding, the clamped halo
    # blocks at the array edges, and the garbage tail of the ragged last tile.
    # (VPU work only; the kernel is HBM-bandwidth bound, so this is free.)
    col = (t * tile_l - 128) + jax.lax.broadcasted_iota(jnp.int32, xwin.shape, 1)
    xwin = jnp.where((col >= 0) & (col < l_in), xwin, jnp.zeros_like(xwin))

    # Per-tap accumulate: output column r uses window column (off0 + k + r).
    off0 = 128 - padding
    acc = jnp.dot(w_ref[0], xwin[:, off0:off0 + tile_l],
                  preferred_element_type=jnp.float32)
    for k in range(1, winsize):
        acc = acc + jnp.dot(w_ref[k], xwin[:, off0 + k:off0 + k + tile_l],
                            preferred_element_type=jnp.float32)
    acc = acc + b_ref[...]                                  # (C_out, 1) broadcast, f32

    if nonlinear == "relu":
        acc = jnp.maximum(acc, 0.0)
    elif nonlinear == "tanh":
        acc = jnp.tanh(acc)

    if short_cut:
        # Residual read straight from the already-loaded (masked) window:
        # global column j sits at lane-aligned window offset 128 + r.
        acc = acc + xwin[:, 128:128 + tile_l].astype(jnp.float32)

    o_ref[0] = acc.astype(o_ref.dtype)


def cnn_encoder_forward(x, weight, bias, *, padding=1, nonlinear="relu",
                        short_cut=False, tile_l=None):
    """Forward pass matching torch CnnEncoder.

    x:      (N, C_in, L)            -- PyTorch Conv1d layout (kept end to end)
    weight: (C_out, C_in, winsize)  -- PyTorch Conv1d weight layout
    bias:   (C_out,)
    returns (N, C_out, L_out), L_out = L + 2*padding - winsize + 1
    """
    n, c_in, l = x.shape
    c_out, c_in_w, winsize = weight.shape
    assert c_in_w == c_in
    assert winsize >= 1 and l >= 1
    l_out = l + 2 * padding - winsize + 1
    assert l_out > 0
    assert 0 <= padding <= 128, "conv padding must fit in the 128-column left halo"
    assert winsize - 1 - padding <= 128, "winsize too large for the 128-column right halo"
    if short_cut:
        assert c_in == c_out and l_out == l

    in_bytes = jnp.dtype(x.dtype).itemsize
    tile_budget, vmem_limit = _vmem_budget_and_limit()
    if tile_l is None:
        tile_l = _choose_tile_l(l_out, n, c_in, c_out, winsize, in_bytes, tile_budget)
    assert tile_l >= 128 and tile_l % 128 == 0, "tile_l must be a positive multiple of 128"

    nt = pl.cdiv(l_out, tile_l)          # number of output length tiles
    bp = tile_l // 128                   # 128-column blocks per tile
    nb128 = pl.cdiv(l, 128)              # 128-column blocks of the input
    nbt = pl.cdiv(l, tile_l)             # tile_l-column blocks of the input

    # Per-tap weights (W, C_out, C_in) in the input's dtype (MXU-native), bias f32.
    w_arg = jnp.transpose(weight, (2, 0, 1)).astype(x.dtype)
    b_arg = bias.reshape(c_out, 1).astype(jnp.float32)

    # Three views of the SAME unpadded input: the main non-overlapping tile and
    # two 128-column halo blocks (clamped at the array edges; the kernel's mask
    # zeroes whatever a clamped/partial block loads outside [0, L)).
    main_spec = pl.BlockSpec((1, c_in, tile_l),
                             lambda b, t: (b, 0, jnp.minimum(t, nbt - 1)))
    left_spec = pl.BlockSpec((1, c_in, 128),
                             lambda b, t: (b, 0, jnp.clip(t * bp - 1, 0, nb128 - 1)))
    right_spec = pl.BlockSpec((1, c_in, 128),
                              lambda b, t: (b, 0, jnp.clip((t + 1) * bp, 0, nb128 - 1)))
    w_spec = pl.BlockSpec((winsize, c_out, c_in), lambda b, t: (0, 0, 0))
    b_spec = pl.BlockSpec((c_out, 1), lambda b, t: (0, 0))
    out_spec = pl.BlockSpec((1, c_out, tile_l), lambda b, t: (b, 0, t))

    kernel = functools.partial(
        _cnn_encoder_kernel,
        tile_l=tile_l, l_in=l, padding=padding, winsize=winsize,
        nonlinear=nonlinear, short_cut=short_cut)

    return pl.pallas_call(
        kernel,
        out_shape=jax.ShapeDtypeStruct((n, c_out, l_out), x.dtype),
        grid_spec=pltpu.PrefetchScalarGridSpec(
            num_scalar_prefetch=0,
            grid=(n, nt),
            in_specs=[main_spec, left_spec, right_spec, w_spec, b_spec],
            out_specs=out_spec,
        ),
        compiler_params=pltpu.CompilerParams(
            dimension_semantics=("parallel", "parallel"),
            vmem_limit_bytes=vmem_limit),
    )(x, x, x, w_arg, b_arg)


def _reference_forward(x, weight, bias, *, padding, nonlinear, short_cut):
    """Pure-JAX reference with torch Conv1d semantics (+ReLU/Tanh, +x)."""
    out = jax.lax.conv_general_dilated(
        x.astype(jnp.float32), weight.astype(jnp.float32),
        window_strides=(1,), padding=[(padding, padding)],
        dimension_numbers=("NCH", "OIH", "NCH"))
    out = out + bias.astype(jnp.float32)[None, :, None]
    if nonlinear == "relu":
        out = jnp.maximum(out, 0.0)
    elif nonlinear == "tanh":
        out = jnp.tanh(out)
    if short_cut:
        out = out + x.astype(jnp.float32)
    return out.astype(x.dtype)


if __name__ == "__main__":
    key = jax.random.PRNGKey(0)
    k1, k2, k3, k4, k5, k6 = jax.random.split(key, 6)

    # --- Test 1: module-default config (d_in=d_out=4, winsize=3, padding=1,
    #             relu, residual short-cut).  Single tile, clamped halos,
    #             ragged input/output edges.
    batch, d_in, d_out, seq_len, winsize, padding = 2, 4, 4, 16, 3, 1
    x = jax.random.normal(k1, (batch, d_in, seq_len), dtype=jnp.float32)
    w = 0.1 * jax.random.normal(k2, (d_out, d_in, winsize), dtype=jnp.float32)
    b = 0.1 * jax.random.normal(k3, (d_out,), dtype=jnp.float32)

    out = jax.block_until_ready(
        cnn_encoder_forward(x, w, b, padding=padding, nonlinear="relu",
                            short_cut=True))
    ref = _reference_forward(x, w, b, padding=padding, nonlinear="relu",
                             short_cut=True)
    assert out.shape == (batch, d_out, seq_len), out.shape
    assert jnp.allclose(out, ref, atol=5e-3, rtol=5e-3), (
        "mismatch vs reference (test 1): max err %e"
        % float(jnp.max(jnp.abs(out - ref))))

    # --- Test 2: C_in multiple of 8, length spanning several tiles (forced
    #             tile_l=128) -> exercises cross-tile halos and the ragged last
    #             output tile; tanh, no short-cut.
    b2, c2_in, c2_out, l2 = 2, 8, 8, 300
    x2 = jax.random.normal(k4, (b2, c2_in, l2), dtype=jnp.float32)
    w2 = 0.1 * jax.random.normal(k5, (c2_out, c2_in, 3), dtype=jnp.float32)
    bz2 = 0.1 * jax.random.normal(k6, (c2_out,), dtype=jnp.float32)

    out2 = jax.block_until_ready(
        cnn_encoder_forward(x2, w2, bz2, padding=1, nonlinear="tanh",
                            short_cut=False, tile_l=128))
    ref2 = _reference_forward(x2, w2, bz2, padding=1, nonlinear="tanh",
                              short_cut=False)
    assert out2.shape == (b2, c2_out, l2), out2.shape
    assert jnp.allclose(out2, ref2, atol=5e-3, rtol=5e-3), (
        "mismatch vs reference (test 2): max err %e"
        % float(jnp.max(jnp.abs(out2 - ref2))))

    print("KERNEL_OK")
</pallas_src>

<mosaic_0001>
module attributes {stable_mosaic.version = 11 : i64} {
  func.func @_cnn_encoder_kernel(%arg0: i32, %arg1: i32, %arg2: memref<1x4x128xf32, #tpu.memory_space<vmem>>, %arg3: memref<1x4x128xf32, #tpu.memory_space<vmem>>, %arg4: memref<1x4x128xf32, #tpu.memory_space<vmem>>, %arg5: memref<3x4x4xf32, #tpu.memory_space<vmem>>, %arg6: memref<4x1xf32, #tpu.memory_space<vmem>>, %arg7: memref<1x4x128xf32, #tpu.memory_space<vmem>>) attributes {dimension_semantics = [#tpu.dimension_semantics<parallel>, #tpu.dimension_semantics<parallel>], iteration_bounds = array<i64: 2, 1>, scalar_prefetch = 0 : i64, scratch_operands = 0 : i64, tpu.core_type = #tpu.core_type<tc>, window_params = [{transform_indices = @transform_0, window_bounds = array<i64: 1, 4, 128>}, {transform_indices = @transform_1, window_bounds = array<i64: 1, 4, 128>}, {transform_indices = @transform_2, window_bounds = array<i64: 1, 4, 128>}, {pipeline_mode = #tpu.pipeline_mode<synchronous>, transform_indices = @transform_3, window_bounds = array<i64: 3, 4, 4>}, {pipeline_mode = #tpu.pipeline_mode<synchronous>, transform_indices = @transform_4, window_bounds = array<i64: 4, 1>}, {transform_indices = @transform_5, window_bounds = array<i64: 1, 4, 128>}]} {
    %c0 = arith.constant 0 : index
    %c0_0 = arith.constant 0 : index
    %c0_1 = arith.constant 0 : index
    %0 = vector.load %arg3[%c0, %c0_0, %c0_1] : memref<1x4x128xf32, #tpu.memory_space<vmem>>, vector<1x4x128xf32>
    %1 = vector.shape_cast %0 : vector<1x4x128xf32> to vector<4x128xf32>
    %c0_2 = arith.constant 0 : index
    %c0_3 = arith.constant 0 : index
    %c0_4 = arith.constant 0 : index
    %2 = vector.load %arg2[%c0_2, %c0_3, %c0_4] : memref<1x4x128xf32, #tpu.memory_space<vmem>>, vector<1x4x128xf32>
    %3 = vector.shape_cast %2 : vector<1x4x128xf32> to vector<4x128xf32>
    %c0_5 = arith.constant 0 : index
    %c0_6 = arith.constant 0 : index
    %c0_7 = arith.constant 0 : index
    %4 = vector.load %arg4[%c0_5, %c0_6, %c0_7] : memref<1x4x128xf32, #tpu.memory_space<vmem>>, vector<1x4x128xf32>
    %5 = vector.shape_cast %4 : vector<1x4x128xf32> to vector<4x128xf32>
    %6 = tpu.concatenate %1, %3, %5 in 1 : vector<4x128xf32>, vector<4x128xf32>, vector<4x128xf32> -> vector<4x384xf32>
    %c128_i32 = arith.constant 128 : i32
    %7 = arith.muli %arg1, %c128_i32 : i32
    %c128_i32_8 = arith.constant 128 : i32
    %8 = arith.subi %7, %c128_i32_8 : i32
    %9 = tpu.iota {dimensions = array<i32: 1>} : vector<4x384xi32>
    %10 = vector.broadcast %8 : i32 to vector<4x384xi32>
    %11 = arith.addi %10, %9 : vector<4x384xi32>
    %c0_i32 = arith.constant 0 : i32
    %12 = vector.broadcast %c0_i32 : i32 to vector<4x384xi32>
    %13 = arith.cmpi sge, %11, %12 : vector<4x384xi32>
    %c16_i32 = arith.constant 16 : i32
    %14 = vector.broadcast %c16_i32 : i32 to vector<4x384xi32>
    %15 = arith.cmpi slt, %11, %14 : vector<4x384xi32>
    %16 = arith.andi %13, %15 : vector<4x384xi1>
    %cst = arith.constant 0.000000e+00 : f32
    %17 = vector.broadcast %cst : f32 to vector<4x384xf32>
    %18 = arith.select %16, %6, %17 : vector<4x384xi1>, vector<4x384xf32>
    %c0_9 = arith.constant 0 : index
    %c0_10 = arith.constant 0 : index
    %c0_11 = arith.constant 0 : index
    %19 = vector.load %arg5[%c0_9, %c0_10, %c0_11] : memref<3x4x4xf32, #tpu.memory_space<vmem>>, vector<1x4x4xf32>
    %20 = vector.shape_cast %19 : vector<1x4x4xf32> to vector<4x4xf32>
    %21 = vector.extract_strided_slice %18 {offsets = [0, 127], sizes = [4, 128], strides = [1, 1]} : vector<4x384xf32> to vector<4x128xf32>
    %cst_12 = arith.constant dense<0.000000e+00> : vector<4x128xf32>
    %22 = tpu.matmul %20, %21, %cst_12 {dimension_numbers = #tpu.dot_dimension_numbers<[1], [0], [0], [1], [0, 0, 1, 1], [], []>} : vector<4x4xf32>, vector<4x128xf32>, vector<4x128xf32> -> vector<4x128xf32>
    %c1 = arith.constant 1 : index
    %c0_13 = arith.constant 0 : index
    %c0_14 = arith.constant 0 : index
    %23 = vector.load %arg5[%c1, %c0_13, %c0_14] : memref<3x4x4xf32, #tpu.memory_space<vmem>>, vector<1x4x4xf32>
    %24 = vector.shape_cast %23 : vector<1x4x4xf32> to vector<4x4xf32>
    %25 = vector.extract_strided_slice %18 {offsets = [0, 128], sizes = [4, 128], strides = [1, 1]} : vector<4x384xf32> to vector<4x128xf32>
    %cst_15 = arith.constant dense<0.000000e+00> : vector<4x128xf32>
    %26 = tpu.matmul %24, %25, %cst_15 {dimension_numbers = #tpu.dot_dimension_numbers<[1], [0], [0], [1], [0, 0, 1, 1], [], []>} : vector<4x4xf32>, vector<4x128xf32>, vector<4x128xf32> -> vector<4x128xf32>
    %27 = arith.addf %22, %26 : vector<4x128xf32>
    %c2 = arith.constant 2 : index
    %c0_16 = arith.constant 0 : index
    %c0_17 = arith.constant 0 : index
    %28 = vector.load %arg5[%c2, %c0_16, %c0_17] : memref<3x4x4xf32, #tpu.memory_space<vmem>>, vector<1x4x4xf32>
    %29 = vector.shape_cast %28 : vector<1x4x4xf32> to vector<4x4xf32>
    %30 = vector.extract_strided_slice %18 {offsets = [0, 129], sizes = [4, 128], strides = [1, 1]} : vector<4x384xf32> to vector<4x128xf32>
    %cst_18 = arith.constant dense<0.000000e+00> : vector<4x128xf32>
    %31 = tpu.matmul %29, %30, %cst_18 {dimension_numbers = #tpu.dot_dimension_numbers<[1], [0], [0], [1], [0, 0, 1, 1], [], []>} : vector<4x4xf32>, vector<4x128xf32>, vector<4x128xf32> -> vector<4x128xf32>
    %32 = arith.addf %27, %31 : vector<4x128xf32>
    %c0_19 = arith.constant 0 : index
    %c0_20 = arith.constant 0 : index
    %33 = vector.load %arg6[%c0_19, %c0_20] : memref<4x1xf32, #tpu.memory_space<vmem>>, vector<4x1xf32>
    %34 = vector.broadcast %33 : vector<4x1xf32> to vector<4x128xf32>
    %35 = arith.addf %32, %34 : vector<4x128xf32>
    %cst_21 = arith.constant 0.000000e+00 : f32
    %36 = vector.broadcast %cst_21 : f32 to vector<4x128xf32>
    %37 = arith.maximumf %35, %36 : vector<4x128xf32>
    %38 = vector.extract_strided_slice %18 {offsets = [0, 128], sizes = [4, 128], strides = [1, 1]} : vector<4x384xf32> to vector<4x128xf32>
    %39 = arith.addf %37, %38 : vector<4x128xf32>
    %c0_22 = arith.constant 0 : index
    %c0_23 = arith.constant 0 : index
    %c0_24 = arith.constant 0 : index
    %40 = vector.load %arg7[%c0_22, %c0_23, %c0_24] : memref<1x4x128xf32, #tpu.memory_space<vmem>>, vector<1x4x128xf32>
    %41 = vector.shape_cast %40 : vector<1x4x128xf32> to vector<4x128xf32>
    %42 = vector.shape_cast %39 : vector<4x128xf32> to vector<1x4x128xf32>
    tpu.vector_store %arg7[%c0_22, %c0_23, %c0_24], %42 {strides = array<i32>} : memref<1x4x128xf32, #tpu.memory_space<vmem>>, vector<1x4x128xf32>,
    return
  }
  func.func @transform_0(%arg0: i32, %arg1: i32) -> (i32, i32, i32) {
    %c0_i32 = arith.constant 0 : i32
    %0 = arith.minsi %arg1, %c0_i32 : i32
    %c0_i32_0 = arith.constant 0 : i32
    %c0_i32_1 = arith.constant 0 : i32
    return %arg0, %c0_i32_0, %0 : i32, i32, i32
  }
  func.func @transform_1(%arg0: i32, %arg1: i32) -> (i32, i32, i32) {
    %c1_i32 = arith.constant 1 : i32
    %0 = arith.muli %arg1, %c1_i32 : i32
    %c1_i32_0 = arith.constant 1 : i32
    %1 = arith.subi %0, %c1_i32_0 : i32
    %c0_i32 = arith.constant 0 : i32
    %c0_i32_1 = arith.constant 0 : i32
    %2 = arith.maxsi %c0_i32, %1 : i32
    %3 = arith.minsi %c0_i32_1, %2 : i32
    %c0_i32_2 = arith.constant 0 : i32
    %c0_i32_3 = arith.constant 0 : i32
    return %arg0, %c0_i32_2, %3 : i32, i32, i32
  }
  func.func @transform_2(%arg0: i32, %arg1: i32) -> (i32, i32, i32) {
    %c1_i32 = arith.constant 1 : i32
    %0 = arith.addi %arg1, %c1_i32 : i32
    %c1_i32_0 = arith.constant 1 : i32
    %1 = arith.muli %0, %c1_i32_0 : i32
    %c0_i32 = arith.constant 0 : i32
    %c0_i32_1 = arith.constant 0 : i32
    %2 = arith.maxsi %c0_i32, %1 : i32
    %3 = arith.minsi %c0_i32_1, %2 : i32
    %c0_i32_2 = arith.constant 0 : i32
    %c0_i32_3 = arith.constant 0 : i32
    return %arg0, %c0_i32_2, %3 : i32, i32, i32
  }
  func.func @transform_3(%arg0: i32, %arg1: i32) -> (i32, i32, i32) {
    %c0_i32 = arith.constant 0 : i32
    %c0_i32_0 = arith.constant 0 : i32
    %c0_i32_1 = arith.constant 0 : i32
    %c0_i32_2 = arith.constant 0 : i32
    return %c0_i32, %c0_i32_0, %c0_i32_1 : i32, i32, i32
  }
  func.func @transform_4(%arg0: i32, %arg1: i32) -> (i32, i32) {
    %c0_i32 = arith.constant 0 : i32
    %c0_i32_0 = arith.constant 0 : i32
    %c0_i32_1 = arith.constant 0 : i32
    return %c0_i32, %c0_i32_0 : i32, i32
  }
  func.func @transform_5(%arg0: i32, %arg1: i32) -> (i32, i32, i32) {
    %c0_i32 = arith.constant 0 : i32
    %c0_i32_0 = arith.constant 0 : i32
    return %arg0, %c0_i32, %arg1 : i32, i32, i32
  }
}

</mosaic_0001>

<llo_original>
// kernel: tpu_custom_call.1
$region0: #{tpu_custom_call.1}
  #allocation0 [shape = 'u32[]', space=smem, size = 0x4, offset = 0x4, fixed_abs, tag = 'smem constant byte address 0x4 - core index']
  #allocation1 [shape = 'u32[144,128]{1,0:T(1,128)}', space=vmem, size = 0x12000, scoped, tag = 'internal scratch']
  %s0 = inlined_call_operand.hbm [shape: f32[2,4,16], index: 0, kind: input, shape index: {}]
  %s1 = inlined_call_operand.hbm [shape: f32[2,4,16], index: 1, kind: input, shape index: {}]
  %s2 = inlined_call_operand.hbm [shape: f32[2,4,16], index: 2, kind: input, shape index: {}]
  %s3 = inlined_call_operand.vmem [shape: f32[3,4,4], index: 3, kind: input, shape index: {}]
  %s4 = inlined_call_operand.vmem [shape: f32[4,1], index: 4, kind: input, shape index: {}]
  %s5 = inlined_call_operand.hbm [shape: f32[2,4,16], index: 5, kind: output, shape index: {}]
  %s6 = sld [smem:[#allocation0]]
  $region65: #{tpu_custom_call.1} parent=0
    _
  %s8 = ssub.s32 1, %s6
  %s9 = scalar_select 0, %s8, %s6
  $region1: #{tpu_custom_call.1} parent=0
    #allocation2 [shape = 'u8[4096]{0}', space=vmem, size = 0x1000, scoped, tag = 'input window, operand 0']
    #allocation3 [shape = 's32[2]{0}', space=sflag, size = 0x8, scoped, tag = 'scoped memory for tpu_custom_call.1']
    #allocation4 [shape = 's32[2]{0}', space=sflag, size = 0x8, scoped, tag = 'scoped memory for tpu_custom_call.1']
    #allocation5 [shape = 'u8[4096]{0}', space=vmem, size = 0x1000, scoped, tag = 'input window, operand 1']
    #allocation6 [shape = 's32[2]{0}', space=sflag, size = 0x8, scoped, tag = 'scoped memory for tpu_custom_call.1']
    #allocation7 [shape = 'u8[4096]{0}', space=vmem, size = 0x1000, scoped, tag = 'input window, operand 2']
    #allocation8 [shape = 'u8[4096]{0}', space=vmem, size = 0x1000, scoped, tag = 'output window, operand 0']
    %10 = vsyncpa [#allocation3], 0
    %s11 = scalar_lea.sflag [#allocation3], 1
    %12 = vsyncpa %s11, 0
    %13 = vsyncpa [#allocation6], 0
    %s14 = scalar_lea.sflag [#allocation6], 1
    %15 = vsyncpa %s14, 0
    %16 = vsyncpa [#allocation4], 0
    %s17 = scalar_lea.sflag [#allocation4], 1
    %18 = vsyncpa %s17, 0
    loop: start=0, step=1, limit=4
    $region2: #{tpu_custom_call.1} parent=1 // loop_pre_header
      _
    $region3: #{tpu_custom_call.1} parent=1 // loop_header
      %s20 = sphi 0, %s24
      %p21 = scmp.ge.s32.totalorder %s20, 4
      %s27 = sphi 0, %s39
      %s28 = sphi 0, %s35
      %s29 = sphi 0, %s27
      %s30 = sphi 0, %s28
      %s31 = sphi 0, %s29
      %s32 = sphi 0, %s30
      %s48 = sphi 0, %s50
      %s51 = sphi 0, %s48
      %s52 = sphi 0, %s51
      %s68 = sphi 0, %s52
      %s86 = sphi 0, %s88
      %s89 = sphi 0, %s86
      %s90 = sphi 0, %s89
      %s106 = sphi 0, %s90
      %s124 = sphi 0, %s126
      %s127 = sphi 0, %s124
      %s128 = sphi 0, %s127
      %s144 = sphi 0, %s128
      %s148 = sphi 0, %s148
      %s150 = sphi 0, %s148
      %s151 = sphi 0, %s150
      %s165 = sphi 0, %s151
      %s169 = sphi 0, %s169
      %s171 = sphi 0, %s169
      %s172 = sphi 0, %s171
      %s186 = sphi 0, %s172
      %s194 = sphi 0, %s196
      %s197 = sphi 0, %s194
      %s198 = sphi 0, %s197
      %s214 = sphi 0, %s198
    $region4: #{tpu_custom_call.1} parent=1 // loop_header_branch
      %23 = sbr.rel (%p21) target = $region8
    $region5: #{tpu_custom_call.1} parent=1 // loop_body
      %s25 = ssub.s32 %s20, 1
      %s26 = ssub.s32 %s20, 2
      %s33 = sadd.s32 1, %s28
      %p34 = scmp.ge.s32.totalorder %s33, 1
      %s35 = scalar_select %p34, 0, %s33
      %s36 = sadd.s32 1, %s27
      %s37 = scalar_select %p34, %s36, %s27
      %p38 = scmp.ge.s32.totalorder %s37, 2
      %s39 = scalar_select %p38, 0, %s37
      %p40 = scmp.lt.s32.totalorder %s28, 0
      %s41 = scalar_select %p40, %s28, 0
      %p42 = scmp.lt.s32.totalorder %s35, 0
      %s43 = scalar_select %p42, %s35, 0
      %s44 = ssub.s32 %s27, %s39
      %s45 = ssub.s32 %s41, %s43
      %s46 = sor.u32 %s44, %s45
      %p47 = scmp.eq.s32.totalorder %s46, 0
      %s49 = sadd.s32 %s48, 1
      %s50 = scalar_select %p47, %s48, %s49
      %p53 = pneg %p47
      %p54 = scmp.eq.s32.totalorder %s20, 1
      %p55 = por %p53, %p54
      %p56 = scmp.ne.s32.totalorder %s48, %s51
      %p57 = scmp.eq.s32.totalorder %s20, 0
      %p58 = por %p56, %p57
      %p59 = scmp.ne.s32.totalorder %s48, %s51
      %p60 = scmp.eq.s32.totalorder %s25, 1
      %p61 = por %p59, %p60
      %p62 = scmp.ne.s32.totalorder %s51, %s52
      %p63 = scmp.eq.s32.totalorder %s25, 0
      %p64 = por %p62, %p63
      %p65 = scmp.ne.s32.totalorder %s51, %s52
      %p66 = scmp.eq.s32.totalorder %s26, 1
      %p67 = por %p65, %p66
      %p69 = scmp.ne.s32.totalorder %s52, %s68
      %p70 = scmp.eq.s32.totalorder %s26, 0
      %p71 = por %p69, %p70
      %s72 = ssub.s32 %s28, 1
      %p73 = scmp.gt.s32.totalorder %s72, 0
      %s74 = scalar_select %p73, %s72, 0
      %p75 = scmp.lt.s32.totalorder %s74, 0
      %s76 = scalar_select %p75, %s74, 0
      %s77 = ssub.s32 %s35, 1
      %p78 = scmp.gt.s32.totalorder %s77, 0
      %s79 = scalar_select %p78, %s77, 0
      %p80 = scmp.lt.s32.totalorder %s79, 0
      %s81 = scalar_select %p80, %s79, 0
      %s82 = ssub.s32 %s27, %s39
      %s83 = ssub.s32 %s76, %s81
      %s84 = sor.u32 %s82, %s83
      %p85 = scmp.eq.s32.totalorder %s84, 0
      %s87 = sadd.s32 %s86, 1
      %s88 = scalar_select %p85, %s86, %s87
      %p91 = pneg %p85
      %p92 = scmp.eq.s32.totalorder %s20, 1
      %p93 = por %p91, %p92
      %p94 = scmp.ne.s32.totalorder %s86, %s89
      %p95 = scmp.eq.s32.totalorder %s20, 0
      %p96 = por %p94, %p95
      %p97 = scmp.ne.s32.totalorder %s86, %s89
      %p98 = scmp.eq.s32.totalorder %s25, 1
      %p99 = por %p97, %p98
      %p100 = scmp.ne.s32.totalorder %s89, %s90
      %p101 = scmp.eq.s32.totalorder %s25, 0
      %p102 = por %p100, %p101
      %p103 = scmp.ne.s32.totalorder %s89, %s90
      %p104 = scmp.eq.s32.totalorder %s26, 1
      %p105 = por %p103, %p104
      %p107 = scmp.ne.s32.totalorder %s90, %s106
      %p108 = scmp.eq.s32.totalorder %s26, 0
      %p109 = por %p107, %p108
      %s110 = sadd.s32 %s28, 1
      %p111 = scmp.gt.s32.totalorder %s110, 0
      %s112 = scalar_select %p111, %s110, 0
      %p113 = scmp.lt.s32.totalorder %s112, 0
      %s114 = scalar_select %p113, %s112, 0
      %s115 = sadd.s32 %s35, 1
      %p116 = scmp.gt.s32.totalorder %s115, 0
      %s117 = scalar_select %p116, %s115, 0
      %p118 = scmp.lt.s32.totalorder %s117, 0
      %s119 = scalar_select %p118, %s117, 0
      %s120 = ssub.s32 %s27, %s39
      %s121 = ssub.s32 %s114, %s119
      %s122 = sor.u32 %s120, %s121
      %p123 = scmp.eq.s32.totalorder %s122, 0
      %s125 = sadd.s32 %s124, 1
      %s126 = scalar_select %p123, %s124, %s125
      %p129 = pneg %p123
      %p130 = scmp.eq.s32.totalorder %s20, 1
      %p131 = por %p129, %p130
      %p132 = scmp.ne.s32.totalorder %s124, %s127
      %p133 = scmp.eq.s32.totalorder %s20, 0
      %p134 = por %p132, %p133
      %p135 = scmp.ne.s32.totalorder %s124, %s127
      %p136 = scmp.eq.s32.totalorder %s25, 1
      %p137 = por %p135, %p136
      %p138 = scmp.ne.s32.totalorder %s127, %s128
      %p139 = scmp.eq.s32.totalorder %s25, 0
      %p140 = por %p138, %p139
      %p141 = scmp.ne.s32.totalorder %s127, %s128
      %p142 = scmp.eq.s32.totalorder %s26, 1
      %p143 = por %p141, %p142
      %p145 = scmp.ne.s32.totalorder %s128, %s144
      %p146 = scmp.eq.s32.totalorder %s26, 0
      %p147 = por %p145, %p146
      %s149 = sadd.s32 %s148, 1
      %p152 = scmp.eq.s32.totalorder %s20, 1
      %p153 = scmp.ne.s32.totalorder %s148, %s150
      %p154 = scmp.eq.s32.totalorder %s20, 0
      %p155 = por %p153, %p154
      %p156 = scmp.ne.s32.totalorder %s148, %s150
      %p157 = scmp.eq.s32.totalorder %s25, 1
      %p158 = por %p156, %p157
      %p159 = scmp.ne.s32.totalorder %s150, %s151
      %p160 = scmp.eq.s32.totalorder %s25, 0
      %p161 = por %p159, %p160
      %p162 = scmp.ne.s32.totalorder %s150, %s151
      %p163 = scmp.eq.s32.totalorder %s26, 1
      %p164 = por %p162, %p163
      %p166 = scmp.ne.s32.totalorder %s151, %s165
      %p167 = scmp.eq.s32.totalorder %s26, 0
      %p168 = por %p166, %p167
      %s170 = sadd.s32 %s169, 1
      %p173 = scmp.eq.s32.totalorder %s20, 1
      %p174 = scmp.ne.s32.totalorder %s169, %s171
      %p175 = scmp.eq.s32.totalorder %s20, 0
      %p176 = por %p174, %p175
      %p177 = scmp.ne.s32.totalorder %s169, %s171
      %p178 = scmp.eq.s32.totalorder %s25, 1
      %p179 = por %p177, %p178
      %p180 = scmp.ne.s32.totalorder %s171, %s172
      %p181 = scmp.eq.s32.totalorder %s25, 0
      %p182 = por %p180, %p181
      %p183 = scmp.ne.s32.totalorder %s171, %s172
      %p184 = scmp.eq.s32.totalorder %s26, 1
      %p185 = por %p183, %p184
      %p187 = scmp.ne.s32.totalorder %s172, %s186
      %p188 = scmp.eq.s32.totalorder %s26, 0
      %p189 = por %p187, %p188
      %s190 = ssub.s32 %s27, %s39
      %s191 = ssub.s32 %s28, %s35
      %s192 = sor.u32 %s190, %s191
      %p193 = scmp.eq.s32.totalorder %s192, 0
      %s195 = sadd.s32 %s194, 1
      %s196 = scalar_select %p193, %s194, %s195
      %p199 = pneg %p193
      %p200 = scmp.eq.s32.totalorder %s20, 1
      %p201 = por %p199, %p200
      %p202 = scmp.ne.s32.totalorder %s194, %s197
      %p203 = scmp.eq.s32.totalorder %s20, 0
      %p204 = por %p202, %p203
      %p205 = scmp.ne.s32.totalorder %s194, %s197
      %p206 = scmp.eq.s32.totalorder %s25, 1
      %p207 = por %p205, %p206
      %p208 = scmp.ne.s32.totalorder %s197, %s198
      %p209 = scmp.eq.s32.totalorder %s25, 0
      %p210 = por %p208, %p209
      %p211 = scmp.ne.s32.totalorder %s197, %s198
      %p212 = scmp.eq.s32.totalorder %s26, 1
      %p213 = por %p211, %p212
      %p215 = scmp.ne.s32.totalorder %s198, %s214
      %p216 = scmp.eq.s32.totalorder %s26, 0
      %p217 = por %p215, %p216
      %p218 = scmp.le.s32.totalorder 1, %s20
      %p219 = scmp.lt.s32.totalorder %s20, 3
      %p220 = pnand %p218, %p219
      %p221 = pneg %p220
      // Predicated region
      $region9: #{tpu_custom_call.1} parent=5 // pred_check
        _
      $region10: #{tpu_custom_call.1} parent=5 // pred_check_branch
        %223 = sbr.rel (%p220) target = $region12
      $region11: #{tpu_custom_call.1} parent=5 // pred_region
        %s224 = ssub.s32 %s20, 1
        // Predicated region
        $region13: #{tpu_custom_call.1} parent=11 // pred_check
          %p225 = pneg %p161
        $region14: #{tpu_custom_call.1} parent=11 // pred_check_branch
          %227 = sbr.rel (%p225) target = $region16
        $region15: #{tpu_custom_call.1} parent=11 // pred_region
          _
        $region16: #{tpu_custom_call.1} parent=11 // pred_fallthru
          _
        // Predicated region
        $region17: #{tpu_custom_call.1} parent=11 // pred_check
          %p228 = pneg %p182
        $region18: #{tpu_custom_call.1} parent=11 // pred_check_branch
          %230 = sbr.rel (%p228) target = $region20
        $region19: #{tpu_custom_call.1} parent=11 // pred_region
          _
        $region20: #{tpu_custom_call.1} parent=11 // pred_fallthru
          _
      $region12: #{tpu_custom_call.1} parent=5 // pred_fallthru
        _
      %p231 = scmp.lt.s32.totalorder %s20, 2
      // Predicated region
      $region21: #{tpu_custom_call.1} parent=5 // pred_check
        %p232 = pneg %p231
      $region22: #{tpu_custom_call.1} parent=5 // pred_check_branch
        %234 = sbr.rel (%p232) target = $region24
      $region23: #{tpu_custom_call.1} parent=5 // pred_region
        // Predicated region
        $region25: #{tpu_custom_call.1} parent=23 // pred_check
          %p235 = pneg %p58
        $region26: #{tpu_custom_call.1} parent=23 // pred_check_branch
          %237 = sbr.rel (%p235) target = $region28
        $region27: #{tpu_custom_call.1} parent=23 // pred_region
          %s238 = sand.u32 %s48, 1
          %s239 = scalar_lea.sflag [#allocation3], %s238
          %s240 = sand.u32 %s48, 1
          %s241 = smul.addr %s240, 4
          %s242 = scalar_lea.vmem [#allocation2], %s241
          %p243 = scmp.lt.s32.totalorder %s28, 0
          %s244 = scalar_select %p243, %s28, 0
          %s246 = ssub.s32 64, 64
          %247 = vsyncadd %s239, %s246
          %s248 = sadd.s32 %s244, %s27
          %s249 = smul.addr %s248, 64
          %s250 = scalar_lea.hbm %s0, %s249
          %s252 = sshll.u32 %s242, 4
          %s253 = int_to_ptr.vmem [resolvable:$true] %s252
          %255 = dma.hbm_to_vmem [thread:$0]  %s250, 64, %s253, %s239
        $region28: #{tpu_custom_call.1} parent=23 // pred_fallthru
          _
        // Predicated region
        $region29: #{tpu_custom_call.1} parent=23 // pred_check
          %p256 = pneg %p96
        $region30: #{tpu_custom_call.1} parent=23 // pred_check_branch
          %258 = sbr.rel (%p256) target = $region32
        $region31: #{tpu_custom_call.1} parent=23 // pred_region
          %s259 = sand.u32 %s20, 1
          %s260 = scalar_lea.sflag [#allocation6], %s259
          %s261 = sand.u32 %s86, 1
          %s262 = smul.addr %s261, 4
          %s263 = scalar_lea.vmem [#allocation5], %s262
          %s264 = ssub.s32 %s28, 1
          %p265 = scmp.gt.s32.totalorder %s264, 0
          %s266 = scalar_select %p265, %s264, 0
          %p267 = scmp.lt.s32.totalorder %s266, 0
          %s268 = scalar_select %p267, %s266, 0
          %s270 = ssub.s32 64, 64
          %271 = vsyncadd %s260, %s270
          %s272 = sadd.s32 %s268, %s27
          %s273 = smul.addr %s272, 64
          %s274 = scalar_lea.hbm %s1, %s273
          %s276 = sshll.u32 %s263, 4
          %s277 = int_to_ptr.vmem [resolvable:$true] %s276
          %279 = dma.hbm_to_vmem [thread:$0]  %s274, 64, %s277, %s260
        $region32: #{tpu_custom_call.1} parent=23 // pred_fallthru
          _
        // Predicated region
        $region33: #{tpu_custom_call.1} parent=23 // pred_check
          %p280 = pneg %p134
        $region34: #{tpu_custom_call.1} parent=23 // pred_check_branch
          %282 = sbr.rel (%p280) target = $region36
        $region35: #{tpu_custom_call.1} parent=23 // pred_region
          %s283 = sand.u32 %s20, 1
          %s284 = scalar_lea.sflag [#allocation6], %s283
          %s285 = sand.u32 %s124, 1
          %s286 = smul.addr %s285, 4
          %s287 = scalar_lea.vmem [#allocation7], %s286
          %s288 = sadd.s32 %s28, 1
          %p289 = scmp.gt.s32.totalorder %s288, 0
          %s290 = scalar_select %p289, %s288, 0
          %p291 = scmp.lt.s32.totalorder %s290, 0
          %s292 = scalar_select %p291, %s290, 0
          %s294 = ssub.s32 64, 64
          %295 = vsyncadd %s284, %s294
          %s296 = sadd.s32 %s292, %s27
          %s297 = smul.addr %s296, 64
          %s298 = scalar_lea.hbm %s2, %s297
          %s300 = sshll.u32 %s287, 4
          %s301 = int_to_ptr.vmem [resolvable:$true] %s300
          %303 = dma.hbm_to_vmem [thread:$0]  %s298, 64, %s301, %s284
        $region36: #{tpu_custom_call.1} parent=23 // pred_fallthru
          _
      $region24: #{tpu_custom_call.1} parent=5 // pred_fallthru
        _
      %p304 = scmp.le.s32.totalorder 1, %s20
      %p305 = scmp.lt.s32.totalorder %s20, 3
      %p306 = pnand %p304, %p305
      %p307 = pneg %p306
      // Predicated region
      $region37: #{tpu_custom_call.1} parent=5 // pred_check
        _
      $region38: #{tpu_custom_call.1} parent=5 // pred_check_branch
        %309 = sbr.rel (%p306) target = $region40
      $region39: #{tpu_custom_call.1} parent=5 // pred_region
        %s310 = ssub.s32 %s20, 1
        %s311 = sand.u32 %s51, 1
        %s312 = scalar_lea.sflag [#allocation3], %s311
        %s313 = sand.u32 %s51, 1
        %s314 = smul.addr %s313, 4
        %s315 = scalar_lea.vmem [#allocation2], %s314
        // Predicated region
        $region41: #{tpu_custom_call.1} parent=39 // pred_check
          %p316 = pneg %p64
        $region42: #{tpu_custom_call.1} parent=39 // pred_check_branch
          %318 = sbr.rel (%p316) target = $region44
        $region43: #{tpu_custom_call.1} parent=39 // pred_region
          %319 = dma.done %s312, 64
        $region44: #{tpu_custom_call.1} parent=39 // pred_fallthru
          _
        %s320 = sand.u32 %s25, 1
        %s321 = scalar_lea.sflag [#allocation6], %s320
        %s322 = sand.u32 %s89, 1
        %s323 = smul.addr %s322, 4
        %s324 = scalar_lea.vmem [#allocation5], %s323
        // Predicated region
        $region45: #{tpu_custom_call.1} parent=39 // pred_check
          %p325 = pneg %p102
        $region46: #{tpu_custom_call.1} parent=39 // pred_check_branch
          %327 = sbr.rel (%p325) target = $region48
        $region47: #{tpu_custom_call.1} parent=39 // pred_region
          %328 = dma.done %s321, 64
        $region48: #{tpu_custom_call.1} parent=39 // pred_fallthru
          _
        %s329 = sand.u32 %s25, 1
        %s330 = scalar_lea.sflag [#allocation6], %s329
        %s331 = sand.u32 %s127, 1
        %s332 = smul.addr %s331, 4
        %s333 = scalar_lea.vmem [#allocation7], %s332
        // Predicated region
        $region49: #{tpu_custom_call.1} parent=39 // pred_check
          %p334 = pneg %p140
        $region50: #{tpu_custom_call.1} parent=39 // pred_check_branch
          %336 = sbr.rel (%p334) target = $region52
        $region51: #{tpu_custom_call.1} parent=39 // pred_region
          %337 = dma.done %s330, 64
        $region52: #{tpu_custom_call.1} parent=39 // pred_fallthru
          _
        %s338 = sand.u32 %s51, 1
        %s339 = scalar_lea.sflag [#allocation3], %s338
        %s340 = sand.u32 %s51, 1
        %s341 = smul.addr %s340, 4
        %s342 = scalar_lea.vmem [#allocation2], %s341
        %p343 = pneg %p64
        %p344 = pneg %p61
        %s345 = sand.u32 %s25, 1
        %s346 = scalar_lea.sflag [#allocation6], %s345
        %s347 = sand.u32 %s89, 1
        %s348 = smul.addr %s347, 4
        %s349 = scalar_lea.vmem [#allocation5], %s348
        %p350 = pneg %p102
        %p351 = pneg %p99
        %s352 = sand.u32 %s25, 1
        %s353 = scalar_lea.sflag [#allocation6], %s352
        %s354 = sand.u32 %s127, 1
        %s355 = smul.addr %s354, 4
        %s356 = scalar_lea.vmem [#allocation7], %s355
        %p357 = pneg %p140
        %p358 = pneg %p137
        %p359 = pneg %p161
        %p360 = pneg %p158
        %p361 = pneg %p182
        %p362 = pneg %p179
        %p363 = pneg %p210
        %p364 = pneg %p207
        %s365 = sand.u32 %s197, 1
        %s366 = scalar_lea.sflag [#allocation4], %s365
        %s367 = sand.u32 %s197, 1
        %s368 = smul.addr %s367, 4
        %s369 = scalar_lea.vmem [#allocation8], %s368
        %p370 = scmp.lt.s32.totalorder %s30, 0
        %s371 = scalar_select %p370, %s30, 0
        %s372 = ssub.s32 %s30, 1
        %p373 = scmp.gt.s32.totalorder %s372, 0
        %s374 = scalar_select %p373, %s372, 0
        %p375 = scmp.lt.s32.totalorder %s374, 0
        %s376 = scalar_select %p375, %s374, 0
        %s377 = sadd.s32 %s30, 1
        %p378 = scmp.gt.s32.totalorder %s377, 0
        %s379 = scalar_select %p378, %s377, 0
        %p380 = scmp.lt.s32.totalorder %s379, 0
        %s381 = scalar_select %p380, %s379, 0
        %v382 = vld [vmem:[%s324] sm:$0xf]
        %v383 = vld [vmem:[%s315] sm:$0xf]
        %v384 = vld [vmem:[%s333] sm:$0xf]
        %s385 = smul.u32 %s30, 128
        %s386 = ssub.s32 %s385, 128
        %v387 = vlaneseq
        %v388 = vand.u32 %v387, 127
        %v389 = vadd.s32 %v388, 128
        %v390 = vadd.s32 %v388, 256
        %v391 = vstv %s386
        %v392 = vadd.s32 %v391, %v388
        %v393 = vadd.s32 %v391, %v389
        %v394 = vadd.s32 %v391, %v390
        %vm395 = vcmp.ge.s32.totalorder %v392, 0
        %vm396 = vcmp.ge.s32.totalorder %v393, 0
        %vm397 = vcmp.ge.s32.totalorder %v394, 0
        %vm398 = vcmp.lt.s32.totalorder %v392, 16
        %vm399 = vcmp.lt.s32.totalorder %v393, 16
        %vm400 = vcmp.lt.s32.totalorder %v394, 16
        %vm401 = vmand %vm395, %vm398
        %vm402 = vmand %vm396, %vm399
        %vm403 = vmand %vm397, %vm400
        %v404 = vsel %vm401, %v382, 0.0
        %v405 = vsel %vm402, %v383, 0.0
        %v406 = vsel %vm403, %v384, 0.0
        %v407 = vld [vmem:[%s3] sm:$0xf]
        %s408 = scalar_lea.vmem %s3, 4
        %v409 = vld [vmem:[%s408] sm:$0xf]
        %vm410 = vcmask 31744
        %v412 = vsel %vm410, %v409, 0
        %vm414 = vcmask 1043456
        %v416 = vsel %vm414, %v405, 0
        %418 = vmatprep.subr.mxu0 0.0
        %419 = vmatpush1.msra.mxu0 %v416
        %420 = vmatprep.subr.mxu0 0.0
        %421 = vmatpush1.msra.mxu0 0.0
        %422 = vmatprep.subr.mxu0 0.0
        %423 = vmatpush1.msra.mxu0 0.0
        %424 = vmatprep.subr.mxu0 0.0
        %425 = vmatpush1.msra.mxu0 0.0
        %426 = vmatprep.subr.mxu0 0.0
        %427 = vmatpush1.msra.mxu0 0.0
        %428 = vmatprep.subr.mxu0 0.0
        %429 = vmatpush1.msra.mxu0 0.0
        %430 = vmatprep.subr.mxu0 0.0
        %431 = vmatpush1.msra.mxu0 0.0
        %432 = vmatprep.subr.mxu0 0.0
        %433 = vmatpush1.msra.mxu0 0.0
        %434 = vmatprep.subr.mxu0 0.0
        %435 = vmatpush1.msra.mxu0 0.0
        %436 = vmatprep.subr.mxu0 0.0
        %437 = vmatpush1.msra.mxu0 0.0
        %438 = vmatprep.subr.mxu0 0.0
        %439 = vmatpush1.msra.mxu0 0.0
        %440 = vmatprep.subr.mxu0 0.0
        %441 = vmatpush1.msra.mxu0 0.0
        %442 = vmatprep.subr.mxu0 0.0
        %443 = vmatpush1.msra.mxu0 0.0
        %444 = vmatprep.subr.mxu0 0.0
        %445 = vmatpush1.msra.mxu0 0.0
        %446 = vmatprep.subr.mxu0 0.0
        %447 = vmatpush1.msra.mxu0 0.0
        %448 = vmatprep.subr.mxu0 0.0
        %449 = vmatpush1.msra.mxu0 0.0
        %450 = vmatprep.subr.mxu0 0.0
        %451 = vmatpush1.msra.mxu0 0.0
        %452 = vmatprep.subr.mxu0 0.0
        %453 = vmatpush1.msra.mxu0 0.0
        %454 = vmatprep.subr.mxu0 0.0
        %455 = vmatpush1.msra.mxu0 0.0
        %456 = vmatprep.subr.mxu0 0.0
        %457 = vmatpush1.msra.mxu0 0.0
        %458 = vmatprep.subr.mxu0 0.0
        %459 = vmatpush1.msra.mxu0 0.0
        %460 = vmatprep.subr.mxu0 0.0
        %461 = vmatpush1.msra.mxu0 0.0
        %462 = vmatprep.subr.mxu0 0.0
        %463 = vmatpush1.msra.mxu0 0.0
        %464 = vmatprep.subr.mxu0 0.0
        %465 = vmatpush1.msra.mxu0 0.0
        %466 = vmatprep.subr.mxu0 0.0
        %467 = vmatpush1.msra.mxu0 0.0
        %468 = vmatprep.subr.mxu0 0.0
        %469 = vmatpush1.msra.mxu0 0.0
        %470 = vmatprep.subr.mxu0 0.0
        %471 = vmatpush1.msra.mxu0 0.0
        %472 = vmatprep.subr.mxu0 0.0
        %473 = vmatpush1.msra.mxu0 0.0
        %474 = vmatprep.subr.mxu0 0.0
        %475 = vmatpush1.msra.mxu0 0.0
        %476 = vmatprep.subr.mxu0 0.0
        %477 = vmatpush1.msra.mxu0 0.0
        %478 = vmatprep.subr.mxu0 0.0
        %479 = vmatpush1.msra.mxu0 0.0
        %480 = vmatprep.subr.mxu0 0.0
        %481 = vmatpush1.msra.mxu0 0.0
        %482 = vmatprep.mubr.f32.mxu0 0.0
        %483 = vmatmul.mubr.f32.gmra.mrb[0].mxu0 %v412
        %v484 = vpop.f32.mrb[0].mxu0
        %v485 = vadd.f32 0.0, %v484
        %v486 = vpop.f32.mrb[0].mxu0
        %487 = vdwg.mxu0
        %489 = vrot.lane.b32.xlu0 %v404, 1
        %v490 = vpop.permute.xlu0 %489
        %491 = vrot.lane.b32.xlu0 %v405, 1
        %v492 = vpop.permute.xlu0 %491
        %vm493 = vcmask 7168
        %v494 = vsel %vm493, %v490, %v492
        %v496 = vsel %vm410, %v407, 0
        %v498 = vsel %vm414, %v494, 0
        %500 = vmatprep.subr.mxu0 0.0
        %501 = vmatpush1.msra.mxu0 %v498
        %502 = vmatprep.subr.mxu0 0.0
        %503 = vmatpush1.msra.mxu0 0.0
        %504 = vmatprep.subr.mxu0 0.0
        %505 = vmatpush1.msra.mxu0 0.0
        %506 = vmatprep.subr.mxu0 0.0
        %507 = vmatpush1.msra.mxu0 0.0
        %508 = vmatprep.subr.mxu0 0.0
        %509 = vmatpush1.msra.mxu0 0.0
        %510 = vmatprep.subr.mxu0 0.0
        %511 = vmatpush1.msra.mxu0 0.0
        %512 = vmatprep.subr.mxu0 0.0
        %513 = vmatpush1.msra.mxu0 0.0
        %514 = vmatprep.subr.mxu0 0.0
        %515 = vmatpush1.msra.mxu0 0.0
        %516 = vmatprep.subr.mxu0 0.0
        %517 = vmatpush1.msra.mxu0 0.0
        %518 = vmatprep.subr.mxu0 0.0
        %519 = vmatpush1.msra.mxu0 0.0
        %520 = vmatprep.subr.mxu0 0.0
        %521 = vmatpush1.msra.mxu0 0.0
        %522 = vmatprep.subr.mxu0 0.0
        %523 = vmatpush1.msra.mxu0 0.0
        %524 = vmatprep.subr.mxu0 0.0
        %525 = vmatpush1.msra.mxu0 0.0
        %526 = vmatprep.subr.mxu0 0.0
        %527 = vmatpush1.msra.mxu0 0.0
        %528 = vmatprep.subr.mxu0 0.0
        %529 = vmatpush1.msra.mxu0 0.0
        %530 = vmatprep.subr.mxu0 0.0
        %531 = vmatpush1.msra.mxu0 0.0
        %532 = vmatprep.subr.mxu0 0.0
        %533 = vmatpush1.msra.mxu0 0.0
        %534 = vmatprep.subr.mxu0 0.0
        %535 = vmatpush1.msra.mxu0 0.0
        %536 = vmatprep.subr.mxu0 0.0
        %537 = vmatpush1.msra.mxu0 0.0
        %538 = vmatprep.subr.mxu0 0.0
        %539 = vmatpush1.msra.mxu0 0.0
        %540 = vmatprep.subr.mxu0 0.0
        %541 = vmatpush1.msra.mxu0 0.0
        %542 = vmatprep.subr.mxu0 0.0
        %543 = vmatpush1.msra.mxu0 0.0
        %544 = vmatprep.subr.mxu0 0.0
        %545 = vmatpush1.msra.mxu0 0.0
        %546 = vmatprep.subr.mxu0 0.0
        %547 = vmatpush1.msra.mxu0 0.0
        %548 = vmatprep.subr.mxu0 0.0
        %549 = vmatpush1.msra.mxu0 0.0
        %550 = vmatprep.subr.mxu0 0.0
        %551 = vmatpush1.msra.mxu0 0.0
        %552 = vmatprep.subr.mxu0 0.0
        %553 = vmatpush1.msra.mxu0 0.0
        %554 = vmatprep.subr.mxu0 0.0
        %555 = vmatpush1.msra.mxu0 0.0
        %556 = vmatprep.subr.mxu0 0.0
        %557 = vmatpush1.msra.mxu0 0.0
        %558 = vmatprep.subr.mxu0 0.0
        %559 = vmatpush1.msra.mxu0 0.0
        %560 = vmatprep.subr.mxu0 0.0
        %561 = vmatpush1.msra.mxu0 0.0
        %562 = vmatprep.subr.mxu0 0.0
        %563 = vmatpush1.msra.mxu0 0.0
        %564 = vmatprep.mubr.f32.mxu0 0.0
        %565 = vmatmul.mubr.f32.gmra.mrb[0].mxu0 %v496
        %v566 = vpop.f32.mrb[0].mxu0
        %v567 = vadd.f32 %v485, %v566
        %v568 = vpop.f32.mrb[0].mxu0
        %569 = vdwg.mxu0
        %s570 = scalar_lea.vmem %s3, 8
        %v571 = vld [vmem:[%s570] sm:$0xf]
        %573 = vrot.lane.b32.xlu0 %v405, 127
        %v574 = vpop.permute.xlu0 %573
        %575 = vrot.lane.b32.xlu0 %v406, 127
        %v576 = vpop.permute.xlu0 %575
        %vm577 = vcmask 1039360
        %v578 = vsel %vm577, %v574, %v576
        %v580 = vsel %vm410, %v571, 0
        %v582 = vsel %vm414, %v578, 0
        %584 = vmatprep.subr.mxu0 0.0
        %585 = vmatpush1.msra.mxu0 %v582
        %586 = vmatprep.subr.mxu0 0.0
        %587 = vmatpush1.msra.mxu0 0.0
        %588 = vmatprep.subr.mxu0 0.0
        %589 = vmatpush1.msra.mxu0 0.0
        %590 = vmatprep.subr.mxu0 0.0
        %591 = vmatpush1.msra.mxu0 0.0
        %592 = vmatprep.subr.mxu0 0.0
        %593 = vmatpush1.msra.mxu0 0.0
        %594 = vmatprep.subr.mxu0 0.0
        %595 = vmatpush1.msra.mxu0 0.0
        %596 = vmatprep.subr.mxu0 0.0
        %597 = vmatpush1.msra.mxu0 0.0
        %598 = vmatprep.subr.mxu0 0.0
        %599 = vmatpush1.msra.mxu0 0.0
        %600 = vmatprep.subr.mxu0 0.0
        %601 = vmatpush1.msra.mxu0 0.0
        %602 = vmatprep.subr.mxu0 0.0
        %603 = vmatpush1.msra.mxu0 0.0
        %604 = vmatprep.subr.mxu0 0.0
        %605 = vmatpush1.msra.mxu0 0.0
        %606 = vmatprep.subr.mxu0 0.0
        %607 = vmatpush1.msra.mxu0 0.0
        %608 = vmatprep.subr.mxu0 0.0
        %609 = vmatpush1.msra.mxu0 0.0
        %610 = vmatprep.subr.mxu0 0.0
        %611 = vmatpush1.msra.mxu0 0.0
        %612 = vmatprep.subr.mxu0 0.0
        %613 = vmatpush1.msra.mxu0 0.0
        %614 = vmatprep.subr.mxu0 0.0
        %615 = vmatpush1.msra.mxu0 0.0
        %616 = vmatprep.subr.mxu0 0.0
        %617 = vmatpush1.msra.mxu0 0.0
        %618 = vmatprep.subr.mxu0 0.0
        %619 = vmatpush1.msra.mxu0 0.0
        %620 = vmatprep.subr.mxu0 0.0
        %621 = vmatpush1.msra.mxu0 0.0
        %622 = vmatprep.subr.mxu0 0.0
        %623 = vmatpush1.msra.mxu0 0.0
        %624 = vmatprep.subr.mxu0 0.0
        %625 = vmatpush1.msra.mxu0 0.0
        %626 = vmatprep.subr.mxu0 0.0
        %627 = vmatpush1.msra.mxu0 0.0
        %628 = vmatprep.subr.mxu0 0.0
        %629 = vmatpush1.msra.mxu0 0.0
        %630 = vmatprep.subr.mxu0 0.0
        %631 = vmatpush1.msra.mxu0 0.0
        %632 = vmatprep.subr.mxu0 0.0
        %633 = vmatpush1.msra.mxu0 0.0
        %634 = vmatprep.subr.mxu0 0.0
        %635 = vmatpush1.msra.mxu0 0.0
        %636 = vmatprep.subr.mxu0 0.0
        %637 = vmatpush1.msra.mxu0 0.0
        %638 = vmatprep.subr.mxu0 0.0
        %639 = vmatpush1.msra.mxu0 0.0
        %640 = vmatprep.subr.mxu0 0.0
        %641 = vmatpush1.msra.mxu0 0.0
        %642 = vmatprep.subr.mxu0 0.0
        %643 = vmatpush1.msra.mxu0 0.0
        %644 = vmatprep.subr.mxu0 0.0
        %645 = vmatpush1.msra.mxu0 0.0
        %646 = vmatprep.subr.mxu0 0.0
        %647 = vmatpush1.msra.mxu0 0.0
        %648 = vmatprep.mubr.f32.mxu0 0.0
        %649 = vmatmul.mubr.f32.gmra.mrb[0].mxu0 %v580
        %v650 = vpop.f32.mrb[0].mxu0
        %v651 = vadd.f32 0.0, %v650
        %v652 = vpop.f32.mrb[0].mxu0
        %653 = vdwg.mxu0
        %v654 = vadd.f32 %v567, %v651
        %v655 = vld [vmem:[%s4] sm:$0xf]
        %657 = vset.pattern.permute.xlu0 0
        %658 = vperm.xlu0 %657, %v655
        %v659 = vpop.permute.xlu0 %658
        %v661 = vadd.f32 %v654, %v659
        %v662 = vmax.f32 %v661, 0.0
        %v663 = vadd.f32 %v662, %v405
        %664 = vst [vmem:[%s369] sm:$0xf] %v663
        %s665 = sand.u32 %s197, 1
        %s666 = scalar_lea.sflag [#allocation4], %s665
        %s667 = sand.u32 %s197, 1
        %s668 = smul.addr %s667, 4
        %s669 = scalar_lea.vmem [#allocation8], %s668
        // Predicated region
        $region53: #{tpu_custom_call.1} parent=39 // pred_check
          %p670 = pneg %p207
        $region54: #{tpu_custom_call.1} parent=39 // pred_check_branch
          %672 = sbr.rel (%p670) target = $region56
        $region55: #{tpu_custom_call.1} parent=39 // pred_region
          %s674 = ssub.s32 64, 64
          %675 = vsyncadd %s666, %s674
          %s676 = sadd.s32 %s30, %s29
          %s677 = smul.addr %s676, 64
          %s678 = scalar_lea.hbm %s5, %s677
          %s680 = sshll.u32 %s669, 4
          %s681 = int_to_ptr.vmem [resolvable:$true] %s680
          %683 = dma.vmem_to_hbm [thread:$0]  %s681, 64, %s678, %s666
        $region56: #{tpu_custom_call.1} parent=39 // pred_fallthru
          _
      $region40: #{tpu_custom_call.1} parent=5 // pred_fallthru
        _
      %p684 = scmp.le.s32.totalorder 2, %s20
      // Predicated region
      $region57: #{tpu_custom_call.1} parent=5 // pred_check
        %p685 = pneg %p684
      $region58: #{tpu_custom_call.1} parent=5 // pred_check_branch
        %687 = sbr.rel (%p685) target = $region60
      $region59: #{tpu_custom_call.1} parent=5 // pred_region
        %s688 = ssub.s32 %s20, 2
        // Predicated region
        $region61: #{tpu_custom_call.1} parent=59 // pred_check
          %p689 = pneg %p213
        $region62: #{tpu_custom_call.1} parent=59 // pred_check_branch
          %691 = sbr.rel (%p689) target = $region64
        $region63: #{tpu_custom_call.1} parent=59 // pred_region
          %s692 = sand.u32 %s198, 1
          %s693 = scalar_lea.sflag [#allocation4], %s692
          %s694 = sand.u32 %s198, 1
          %s695 = smul.addr %s694, 4
          %s696 = scalar_lea.vmem [#allocation8], %s695
          %697 = dma.done %s693, 64
        $region64: #{tpu_custom_call.1} parent=59 // pred_fallthru
          _
      $region60: #{tpu_custom_call.1} parent=5 // pred_fallthru
        _
    $region6: #{tpu_custom_call.1} parent=1 // loop_footer
      %s24 = sadd.s32 1, %s20
    $region7: #{tpu_custom_call.1} parent=1 // loop_footer_branch
      %19 = sbr.rel target = $region3
    $region8: #{tpu_custom_call.1} parent=1 // loop_exit
      _
    %698 = vsyncpa [#allocation3], 1
    %s699 = scalar_lea.sflag [#allocation3], 1
    %700 = vsyncpa %s699, 1
    %701 = vsyncpa [#allocation6], 1
    %s702 = scalar_lea.sflag [#allocation6], 1
    %703 = vsyncpa %s702, 1
    %704 = vsyncpa [#allocation4], 1
    %s705 = scalar_lea.sflag [#allocation4], 1
    %706 = vsyncpa %s705, 1

</llo_original>
